<compile_context>
chip_gen: v5e
topology: v5e:2x2
jax: 0.10.0
libtpu: 0.0.40
codegen_flags: <defaults>
</compile_context>

<pallas_src>
import jax
import jax.numpy as jnp
import numpy as np
from jax.experimental import pallas as pl
from jax.experimental.pallas import tpu as pltpu

# ------------------------- model configuration -------------------------
OBS_DIM = 24        # flat centralized observation dim (MLPBase path)
HIDDEN = 32         # args.hidden_size
LAYER_N = 1         # args.layer_N   (number of fc2 blocks)
RECURRENT_N = 1     # args.recurrent_N (GRU layers)
EPS = 1e-5          # nn.LayerNorm default eps
MXU_DTYPE = jnp.bfloat16   # matmul-weight / MXU-input dtype (f32 accumulate)

# column layout of the consolidated per-feature vector array `vecs` (H, NV):
#   [b1, ln1_g, ln1_b]                                    (fc1)
#   [b2_i, ln2_g_i, ln2_b_i]      for i in range(LAYER_N) (fc2 stack)
#   [b_r, b_z, b_in, b_hn]        for l in range(RECURRENT_N) (GRU, gate biases)
#   [lnr_g * wv]                                          (fused post-GRU LN * v_out)
_NV_FC1 = 3
_NV_FC2 = 3 * LAYER_N
_NV_GRU = 4 * RECURRENT_N
NV = _NV_FC1 + _NV_FC2 + _NV_GRU + 1


def _ln_cols(x, g, b):
    """LayerNorm over the feature (sublane) axis; g/b are (F, 1) columns."""
    mu = jnp.mean(x, axis=0, keepdims=True)
    var = jnp.mean((x - mu) ** 2, axis=0, keepdims=True)
    return (x - mu) * jax.lax.rsqrt(var + EPS) * g + b


def r_critic_kernel(obs_ref, h_ref, mask_ref,
                    w1_ref, w2_ref, wih_ref, whh_ref,
                    obs_ln_ref, vecs_ref, vbias_ref,
                    values_ref, hout_ref):
    H = HIDDEN
    col = lambda c: vecs_ref[:, c:c + 1]              # (H, 1) static column slice

    # ---------------- MLPBase (batch-in-lanes: (features, TB)) ----------------
    x = obs_ref[...]                                   # (OBS_DIM, TB) f32
    x = _ln_cols(x, obs_ln_ref[:, 0:1], obs_ln_ref[:, 1:2])   # feature_norm

    # fc1: Linear -> ReLU -> LayerNorm   (bf16 MXU inputs, f32 accumulation)
    x = jnp.dot(w1_ref[...], x.astype(MXU_DTYPE),
                preferred_element_type=jnp.float32) + col(0)
    x = jnp.maximum(x, 0.0)
    x = _ln_cols(x, col(1), col(2))

    # fc2 stack (static Python loop, weights stacked along the leading axis)
    for i in range(LAYER_N):
        c0 = _NV_FC1 + 3 * i
        y = jnp.dot(w2_ref[i], x.astype(MXU_DTYPE),
                    preferred_element_type=jnp.float32) + col(c0)
        y = jnp.maximum(y, 0.0)
        x = _ln_cols(y, col(c0 + 1), col(c0 + 2))

    # ---------------- RNNLayer (GRU, one time step) ----------------
    mask = mask_ref[...]                               # (1, TB)
    inp = x
    for l in range(RECURRENT_N):
        c0 = _NV_FC1 + _NV_FC2 + 4 * l
        b_r, b_z, b_in, b_hn = col(c0), col(c0 + 1), col(c0 + 2), col(c0 + 3)
        h = h_ref[l * H:(l + 1) * H, :] * mask         # masked hidden (H, TB)
        # Two fused gate matmuls; gates stacked r | z | n along sublanes, so
        # every gate slice below is sublane-tile aligned (H = 32).
        gx = jnp.dot(wih_ref[l], inp.astype(MXU_DTYPE),
                     preferred_element_type=jnp.float32)    # (3H, TB)
        gh = jnp.dot(whh_ref[l], h.astype(MXU_DTYPE),
                     preferred_element_type=jnp.float32)    # (3H, TB)
        r = jax.nn.sigmoid(gx[0:H, :] + gh[0:H, :] + b_r)
        z = jax.nn.sigmoid(gx[H:2 * H, :] + gh[H:2 * H, :] + b_z)
        n = jnp.tanh(gx[2 * H:3 * H, :] + b_in + r * (gh[2 * H:3 * H, :] + b_hn))
        hnew = (1.0 - z) * n + z * h
        hout_ref[l * H:(l + 1) * H, :] = hnew          # lane-dense store (H, TB)
        inp = hnew

    # ---------------- post-GRU LayerNorm fused with v_out ----------------
    mu = jnp.mean(inp, axis=0, keepdims=True)
    var = jnp.mean((inp - mu) ** 2, axis=0, keepdims=True)
    xhat = (inp - mu) * jax.lax.rsqrt(var + EPS)
    g_fused = col(NV - 1)                              # lnr_g * wv   (H, 1)
    values_ref[...] = (jnp.sum(xhat * g_fused, axis=0, keepdims=True)
                       + vbias_ref[...])               # (1, TB) lane-dense store


def r_critic_forward(params, cent_obs, rnn_states, masks, tile_b=None):
    """cent_obs: (B, OBS_DIM); rnn_states: (B, R, H); masks: (B, 1)."""
    B = cent_obs.shape[0]
    R, H = RECURRENT_N, HIDDEN

    # batch-in-lanes layout: features on sublanes, batch on lanes (wrapper-side
    # layout plumbing on tiny tensors).
    obs_t = cent_obs.astype(jnp.float32).T                               # (OBS_DIM, B)
    h_t = jnp.transpose(rnn_states.astype(jnp.float32), (1, 2, 0)).reshape(R * H, B)
    m_t = masks.astype(jnp.float32).T                                    # (1, B)

    if tile_b is None:
        tile_b = 128                       # single fat grid step for B <= 128
    Bp = ((B + tile_b - 1) // tile_b) * tile_b
    if Bp != B:
        pad = ((0, 0), (0, Bp - B))
        obs_t = jnp.pad(obs_t, pad)
        h_t = jnp.pad(h_t, pad)
        m_t = jnp.pad(m_t, pad)
    grid = (Bp // tile_b,)

    def tiled(rows):
        return pl.BlockSpec((rows, tile_b), lambda i: (0, i))

    def resident(arr):
        zeros = (0,) * arr.ndim
        return pl.BlockSpec(arr.shape, lambda i: zeros)   # weights stay VMEM-resident

    in_specs = ([tiled(OBS_DIM), tiled(R * H), tiled(1)]
                + [resident(p) for p in params])
    out_specs = (tiled(1), tiled(R * H))

    values_t, hout_t = pl.pallas_call(
        r_critic_kernel,
        grid=grid,
        out_shape=(jax.ShapeDtypeStruct((1, Bp), jnp.float32),
                   jax.ShapeDtypeStruct((R * H, Bp), jnp.float32)),
        in_specs=in_specs,
        out_specs=out_specs,
        compiler_params=pltpu.CompilerParams(
            dimension_semantics=("parallel",)),
    )(obs_t, h_t, m_t, *params)

    values = values_t[:, :B].T                                            # (B, 1)
    new_states = jnp.transpose(hout_t[:, :B].reshape(R, H, B), (2, 0, 1)) # (B, R, H)
    return values, new_states


# ------------------------- deterministic parameter init -------------------------
def init_raw_params(key):
    """Raw parameters in native PyTorch layouts (Linear: (out, in); GRU: (3H, H))."""
    ks = jax.random.split(key, 9)
    H = HIDDEN

    def w(k, shape, scale=0.1):
        return (scale * jax.random.normal(k, shape)).astype(jnp.float32)

    ones = lambda s: jnp.ones(s, jnp.float32)
    zeros = lambda s: jnp.zeros(s, jnp.float32)

    return dict(
        fn_g=ones((OBS_DIM,)), fn_b=zeros((OBS_DIM,)),          # feature_norm
        w1=w(ks[0], (H, OBS_DIM)), b1=w(ks[1], (H,), 0.05),     # fc1 Linear
        ln1_g=ones((H,)), ln1_b=zeros((H,)),
        w2=w(ks[2], (LAYER_N, H, H)), b2=w(ks[3], (LAYER_N, H), 0.05),
        ln2_g=ones((LAYER_N, H)), ln2_b=zeros((LAYER_N, H)),
        # GRU, PyTorch gate order r | z | n stacked along the output axis
        wih=w(ks[4], (RECURRENT_N, 3 * H, H)),
        whh=w(ks[5], (RECURRENT_N, 3 * H, H)),
        bih=w(ks[6], (RECURRENT_N, 3 * H), 0.05),
        bhh=w(ks[7], (RECURRENT_N, 3 * H), 0.05),
        lnr_g=ones((H,)), lnr_b=zeros((H,)),                    # RNNLayer.norm
        wv=w(ks[8], (H,)), bv=zeros(()),                        # v_out
    )


def pack_params(raw):
    """Pack raw params into the kernel's consolidated batch-in-lanes layout."""
    H = HIDDEN
    cast = lambda a: a.astype(MXU_DTYPE)

    w1 = cast(raw["w1"])            # (H, OBS_DIM)   y = W @ x, no transpose needed
    w2 = cast(raw["w2"])            # (L, H, H)
    wih = cast(raw["wih"])          # (R, 3H, H)
    whh = cast(raw["whh"])          # (R, 3H, H)

    obs_ln = jnp.stack([raw["fn_g"], raw["fn_b"]], axis=1)      # (OBS_DIM, 2)

    cols = [raw["b1"], raw["ln1_g"], raw["ln1_b"]]
    for i in range(LAYER_N):
        cols += [raw["b2"][i], raw["ln2_g"][i], raw["ln2_b"][i]]
    for l in range(RECURRENT_N):
        bih, bhh = raw["bih"][l], raw["bhh"][l]
        # fold bhh_r / bhh_z into the summed gate bias; bhh_n stays inside the
        # r * (...) term (PyTorch GRU semantics); bih_n added outside it.
        cols += [bih[0:H] + bhh[0:H],
                 bih[H:2 * H] + bhh[H:2 * H],
                 bih[2 * H:3 * H],
                 bhh[2 * H:3 * H]]
    cols += [raw["lnr_g"] * raw["wv"]]                           # fused LN gain * wv
    vecs = jnp.stack(cols, axis=1).astype(jnp.float32)           # (H, NV)

    vbias = (jnp.sum(raw["lnr_b"] * raw["wv"]) + raw["bv"]).reshape(1, 1)
    return (w1, w2, wih, whh, obs_ln, vecs, vbias.astype(jnp.float32))


# ------------------------- pure-JAX reference (textbook math, raw params) -------------------------
def reference_forward(raw, cent_obs, rnn_states, masks):
    H = HIDDEN

    def ln(x, g, b):
        mu = x.mean(-1, keepdims=True)
        var = ((x - mu) ** 2).mean(-1, keepdims=True)
        return (x - mu) / jnp.sqrt(var + EPS) * g + b

    x = ln(cent_obs, raw["fn_g"], raw["fn_b"])
    x = ln(jnp.maximum(x @ raw["w1"].T + raw["b1"], 0.0), raw["ln1_g"], raw["ln1_b"])
    for i in range(LAYER_N):
        x = ln(jnp.maximum(x @ raw["w2"][i].T + raw["b2"][i], 0.0),
               raw["ln2_g"][i], raw["ln2_b"][i])

    inp, h_out = x, []
    for l in range(RECURRENT_N):
        h = rnn_states[:, l, :] * masks
        gx = inp @ raw["wih"][l].T + raw["bih"][l]
        gh = h @ raw["whh"][l].T + raw["bhh"][l]
        r = jax.nn.sigmoid(gx[:, 0:H] + gh[:, 0:H])
        z = jax.nn.sigmoid(gx[:, H:2 * H] + gh[:, H:2 * H])
        n = jnp.tanh(gx[:, 2 * H:] + r * gh[:, 2 * H:])
        hnew = (1.0 - z) * n + z * h
        h_out.append(hnew)
        inp = hnew
    x = ln(inp, raw["lnr_g"], raw["lnr_b"])
    values = x @ raw["wv"].reshape(H, 1) + raw["bv"]
    return values, jnp.stack(h_out, axis=1)


if __name__ == "__main__":
    BATCH = 32                                   # multiple rollout threads per call
    key = jax.random.PRNGKey(0)
    k_params, k_obs, k_h = jax.random.split(key, 3)

    raw = init_raw_params(k_params)
    params = pack_params(raw)
    cent_obs = jax.random.normal(k_obs, (BATCH, OBS_DIM), jnp.float32)
    rnn_states = jax.random.normal(k_h, (BATCH, RECURRENT_N, HIDDEN), jnp.float32)
    masks = (jnp.arange(BATCH) % 4 != 0).astype(jnp.float32).reshape(BATCH, 1)

    fwd = jax.jit(r_critic_forward)
    values, new_states = fwd(params, cent_obs, rnn_states, masks)
    values = jax.block_until_ready(values)
    new_states = jax.block_until_ready(new_states)

    ref_values, ref_states = reference_forward(raw, cent_obs, rnn_states, masks)

    assert values.shape == (BATCH, 1)
    assert new_states.shape == (BATCH, RECURRENT_N, HIDDEN)
    assert np.allclose(np.asarray(values), np.asarray(ref_values), atol=5e-2, rtol=5e-2)
    assert np.allclose(np.asarray(new_states), np.asarray(ref_states), atol=5e-2, rtol=5e-2)

    print("KERNEL_OK")
</pallas_src>

<mosaic_0001>
module attributes {stable_mosaic.version = 11 : i64} {
  func.func @r_critic_kernel(%arg0: i32, %arg1: memref<24x128xf32, #tpu.memory_space<vmem>>, %arg2: memref<32x128xf32, #tpu.memory_space<vmem>>, %arg3: memref<1x128xf32, #tpu.memory_space<vmem>>, %arg4: memref<32x24xbf16, #tpu.memory_space<vmem>>, %arg5: memref<1x32x32xbf16, #tpu.memory_space<vmem>>, %arg6: memref<1x96x32xbf16, #tpu.memory_space<vmem>>, %arg7: memref<1x96x32xbf16, #tpu.memory_space<vmem>>, %arg8: memref<24x2xf32, #tpu.memory_space<vmem>>, %arg9: memref<32x11xf32, #tpu.memory_space<vmem>>, %arg10: memref<1x1xf32, #tpu.memory_space<vmem>>, %arg11: memref<1x128xf32, #tpu.memory_space<vmem>>, %arg12: memref<32x128xf32, #tpu.memory_space<vmem>>) attributes {dimension_semantics = [#tpu.dimension_semantics<parallel>], iteration_bounds = array<i64: 1>, scalar_prefetch = 0 : i64, scratch_operands = 0 : i64, tpu.core_type = #tpu.core_type<tc>, window_params = [{transform_indices = @transform_0, window_bounds = array<i64: 24, 128>}, {transform_indices = @transform_1, window_bounds = array<i64: 32, 128>}, {transform_indices = @transform_2, window_bounds = array<i64: 1, 128>}, {pipeline_mode = #tpu.pipeline_mode<synchronous>, transform_indices = @transform_3, window_bounds = array<i64: 32, 24>}, {pipeline_mode = #tpu.pipeline_mode<synchronous>, transform_indices = @transform_4, window_bounds = array<i64: 1, 32, 32>}, {pipeline_mode = #tpu.pipeline_mode<synchronous>, transform_indices = @transform_5, window_bounds = array<i64: 1, 96, 32>}, {pipeline_mode = #tpu.pipeline_mode<synchronous>, transform_indices = @transform_6, window_bounds = array<i64: 1, 96, 32>}, {pipeline_mode = #tpu.pipeline_mode<synchronous>, transform_indices = @transform_7, window_bounds = array<i64: 24, 2>}, {pipeline_mode = #tpu.pipeline_mode<synchronous>, transform_indices = @transform_8, window_bounds = array<i64: 32, 11>}, {pipeline_mode = #tpu.pipeline_mode<synchronous>, transform_indices = @transform_9, window_bounds = array<i64: 1, 1>}, {transform_indices = @transform_10, window_bounds = array<i64: 1, 128>}, {transform_indices = @transform_11, window_bounds = array<i64: 32, 128>}]} {
    %c0 = arith.constant 0 : index
    %c0_0 = arith.constant 0 : index
    %0 = vector.load %arg1[%c0, %c0_0] : memref<24x128xf32, #tpu.memory_space<vmem>>, vector<24x128xf32>
    %c0_1 = arith.constant 0 : index
    %c0_2 = arith.constant 0 : index
    %1 = vector.load %arg8[%c0_1, %c0_2] : memref<24x2xf32, #tpu.memory_space<vmem>>, vector<24x1xf32>
    %c0_3 = arith.constant 0 : index
    %c1 = arith.constant 1 : index
    %2 = vector.load %arg8[%c0_3, %c1] : memref<24x2xf32, #tpu.memory_space<vmem>>, vector<24x1xf32>
    %cst = arith.constant dense<0.000000e+00> : vector<128xf32>
    %3 = vector.multi_reduction <add>, %0, %cst [0] : vector<24x128xf32> to vector<128xf32>
    %4 = vector.shape_cast %3 : vector<128xf32> to vector<1x128xf32>
    %cst_4 = arith.constant 2.400000e+01 : f32
    %5 = vector.broadcast %cst_4 : f32 to vector<1x128xf32>
    %6 = arith.divf %4, %5 : vector<1x128xf32>
    %7 = vector.broadcast %6 : vector<1x128xf32> to vector<24x128xf32>
    %8 = arith.subf %0, %7 : vector<24x128xf32>
    %9 = arith.mulf %8, %8 : vector<24x128xf32>
    %cst_5 = arith.constant dense<0.000000e+00> : vector<128xf32>
    %10 = vector.multi_reduction <add>, %9, %cst_5 [0] : vector<24x128xf32> to vector<128xf32>
    %11 = vector.shape_cast %10 : vector<128xf32> to vector<1x128xf32>
    %cst_6 = arith.constant 2.400000e+01 : f32
    %12 = vector.broadcast %cst_6 : f32 to vector<1x128xf32>
    %13 = arith.divf %11, %12 : vector<1x128xf32>
    %14 = vector.broadcast %6 : vector<1x128xf32> to vector<24x128xf32>
    %15 = arith.subf %0, %14 : vector<24x128xf32>
    %cst_7 = arith.constant 9.99999974E-6 : f32
    %16 = vector.broadcast %cst_7 : f32 to vector<1x128xf32>
    %17 = arith.addf %13, %16 : vector<1x128xf32>
    %18 = math.rsqrt %17 : vector<1x128xf32>
    %19 = vector.broadcast %18 : vector<1x128xf32> to vector<24x128xf32>
    %20 = arith.mulf %15, %19 : vector<24x128xf32>
    %21 = vector.broadcast %1 : vector<24x1xf32> to vector<24x128xf32>
    %22 = arith.mulf %20, %21 : vector<24x128xf32>
    %23 = vector.broadcast %2 : vector<24x1xf32> to vector<24x128xf32>
    %24 = arith.addf %22, %23 : vector<24x128xf32>
    %c0_8 = arith.constant 0 : index
    %c0_9 = arith.constant 0 : index
    %25 = vector.load %arg4[%c0_8, %c0_9] : memref<32x24xbf16, #tpu.memory_space<vmem>>, vector<32x24xbf16>
    %26 = arith.truncf %24 : vector<24x128xf32> to vector<24x128xbf16>
    %cst_10 = arith.constant dense<0.000000e+00> : vector<32x128xf32>
    %27 = tpu.matmul %25, %26, %cst_10 {dimension_numbers = #tpu.dot_dimension_numbers<[1], [0], [0], [1], [0, 0, 1, 1], [], []>} : vector<32x24xbf16>, vector<24x128xbf16>, vector<32x128xf32> -> vector<32x128xf32>
    %c0_11 = arith.constant 0 : index
    %c0_12 = arith.constant 0 : index
    %28 = vector.load %arg9[%c0_11, %c0_12] : memref<32x11xf32, #tpu.memory_space<vmem>>, vector<32x1xf32>
    %29 = vector.broadcast %28 : vector<32x1xf32> to vector<32x128xf32>
    %30 = arith.addf %27, %29 : vector<32x128xf32>
    %cst_13 = arith.constant 0.000000e+00 : f32
    %31 = vector.broadcast %cst_13 : f32 to vector<32x128xf32>
    %32 = arith.maximumf %30, %31 : vector<32x128xf32>
    %c0_14 = arith.constant 0 : index
    %c1_15 = arith.constant 1 : index
    %33 = vector.load %arg9[%c0_14, %c1_15] : memref<32x11xf32, #tpu.memory_space<vmem>>, vector<32x1xf32>
    %c0_16 = arith.constant 0 : index
    %c2 = arith.constant 2 : index
    %34 = vector.load %arg9[%c0_16, %c2] : memref<32x11xf32, #tpu.memory_space<vmem>>, vector<32x1xf32>
    %cst_17 = arith.constant dense<0.000000e+00> : vector<128xf32>
    %35 = vector.multi_reduction <add>, %32, %cst_17 [0] : vector<32x128xf32> to vector<128xf32>
    %36 = vector.shape_cast %35 : vector<128xf32> to vector<1x128xf32>
    %cst_18 = arith.constant 3.200000e+01 : f32
    %37 = vector.broadcast %cst_18 : f32 to vector<1x128xf32>
    %38 = arith.divf %36, %37 : vector<1x128xf32>
    %39 = vector.broadcast %38 : vector<1x128xf32> to vector<32x128xf32>
    %40 = arith.subf %32, %39 : vector<32x128xf32>
    %41 = arith.mulf %40, %40 : vector<32x128xf32>
    %cst_19 = arith.constant dense<0.000000e+00> : vector<128xf32>
    %42 = vector.multi_reduction <add>, %41, %cst_19 [0] : vector<32x128xf32> to vector<128xf32>
    %43 = vector.shape_cast %42 : vector<128xf32> to vector<1x128xf32>
    %cst_20 = arith.constant 3.200000e+01 : f32
    %44 = vector.broadcast %cst_20 : f32 to vector<1x128xf32>
    %45 = arith.divf %43, %44 : vector<1x128xf32>
    %46 = vector.broadcast %38 : vector<1x128xf32> to vector<32x128xf32>
    %47 = arith.subf %32, %46 : vector<32x128xf32>
    %cst_21 = arith.constant 9.99999974E-6 : f32
    %48 = vector.broadcast %cst_21 : f32 to vector<1x128xf32>
    %49 = arith.addf %45, %48 : vector<1x128xf32>
    %50 = math.rsqrt %49 : vector<1x128xf32>
    %51 = vector.broadcast %50 : vector<1x128xf32> to vector<32x128xf32>
    %52 = arith.mulf %47, %51 : vector<32x128xf32>
    %53 = vector.broadcast %33 : vector<32x1xf32> to vector<32x128xf32>
    %54 = arith.mulf %52, %53 : vector<32x128xf32>
    %55 = vector.broadcast %34 : vector<32x1xf32> to vector<32x128xf32>
    %56 = arith.addf %54, %55 : vector<32x128xf32>
    %c0_22 = arith.constant 0 : index
    %c0_23 = arith.constant 0 : index
    %c0_24 = arith.constant 0 : index
    %57 = vector.load %arg5[%c0_22, %c0_23, %c0_24] : memref<1x32x32xbf16, #tpu.memory_space<vmem>>, vector<1x32x32xbf16>
    %58 = vector.shape_cast %57 : vector<1x32x32xbf16> to vector<32x32xbf16>
    %59 = arith.truncf %56 : vector<32x128xf32> to vector<32x128xbf16>
    %cst_25 = arith.constant dense<0.000000e+00> : vector<32x128xf32>
    %60 = tpu.matmul %58, %59, %cst_25 {dimension_numbers = #tpu.dot_dimension_numbers<[1], [0], [0], [1], [0, 0, 1, 1], [], []>} : vector<32x32xbf16>, vector<32x128xbf16>, vector<32x128xf32> -> vector<32x128xf32>
    %c0_26 = arith.constant 0 : index
    %c3 = arith.constant 3 : index
    %61 = vector.load %arg9[%c0_26, %c3] : memref<32x11xf32, #tpu.memory_space<vmem>>, vector<32x1xf32>
    %62 = vector.broadcast %61 : vector<32x1xf32> to vector<32x128xf32>
    %63 = arith.addf %60, %62 : vector<32x128xf32>
    %cst_27 = arith.constant 0.000000e+00 : f32
    %64 = vector.broadcast %cst_27 : f32 to vector<32x128xf32>
    %65 = arith.maximumf %63, %64 : vector<32x128xf32>
    %c0_28 = arith.constant 0 : index
    %c4 = arith.constant 4 : index
    %66 = vector.load %arg9[%c0_28, %c4] : memref<32x11xf32, #tpu.memory_space<vmem>>, vector<32x1xf32>
    %c0_29 = arith.constant 0 : index
    %c5 = arith.constant 5 : index
    %67 = vector.load %arg9[%c0_29, %c5] : memref<32x11xf32, #tpu.memory_space<vmem>>, vector<32x1xf32>
    %cst_30 = arith.constant dense<0.000000e+00> : vector<128xf32>
    %68 = vector.multi_reduction <add>, %65, %cst_30 [0] : vector<32x128xf32> to vector<128xf32>
    %69 = vector.shape_cast %68 : vector<128xf32> to vector<1x128xf32>
    %cst_31 = arith.constant 3.200000e+01 : f32
    %70 = vector.broadcast %cst_31 : f32 to vector<1x128xf32>
    %71 = arith.divf %69, %70 : vector<1x128xf32>
    %72 = vector.broadcast %71 : vector<1x128xf32> to vector<32x128xf32>
    %73 = arith.subf %65, %72 : vector<32x128xf32>
    %74 = arith.mulf %73, %73 : vector<32x128xf32>
    %cst_32 = arith.constant dense<0.000000e+00> : vector<128xf32>
    %75 = vector.multi_reduction <add>, %74, %cst_32 [0] : vector<32x128xf32> to vector<128xf32>
    %76 = vector.shape_cast %75 : vector<128xf32> to vector<1x128xf32>
    %cst_33 = arith.constant 3.200000e+01 : f32
    %77 = vector.broadcast %cst_33 : f32 to vector<1x128xf32>
    %78 = arith.divf %76, %77 : vector<1x128xf32>
    %79 = vector.broadcast %71 : vector<1x128xf32> to vector<32x128xf32>
    %80 = arith.subf %65, %79 : vector<32x128xf32>
    %cst_34 = arith.constant 9.99999974E-6 : f32
    %81 = vector.broadcast %cst_34 : f32 to vector<1x128xf32>
    %82 = arith.addf %78, %81 : vector<1x128xf32>
    %83 = math.rsqrt %82 : vector<1x128xf32>
    %84 = vector.broadcast %83 : vector<1x128xf32> to vector<32x128xf32>
    %85 = arith.mulf %80, %84 : vector<32x128xf32>
    %86 = vector.broadcast %66 : vector<32x1xf32> to vector<32x128xf32>
    %87 = arith.mulf %85, %86 : vector<32x128xf32>
    %88 = vector.broadcast %67 : vector<32x1xf32> to vector<32x128xf32>
    %89 = arith.addf %87, %88 : vector<32x128xf32>
    %c0_35 = arith.constant 0 : index
    %c0_36 = arith.constant 0 : index
    %90 = vector.load %arg3[%c0_35, %c0_36] : memref<1x128xf32, #tpu.memory_space<vmem>>, vector<1x128xf32>
    %c0_37 = arith.constant 0 : index
    %c6 = arith.constant 6 : index
    %91 = vector.load %arg9[%c0_37, %c6] : memref<32x11xf32, #tpu.memory_space<vmem>>, vector<32x1xf32>
    %c0_38 = arith.constant 0 : index
    %c7 = arith.constant 7 : index
    %92 = vector.load %arg9[%c0_38, %c7] : memref<32x11xf32, #tpu.memory_space<vmem>>, vector<32x1xf32>
    %c0_39 = arith.constant 0 : index
    %c8 = arith.constant 8 : index
    %93 = vector.load %arg9[%c0_39, %c8] : memref<32x11xf32, #tpu.memory_space<vmem>>, vector<32x1xf32>
    %c0_40 = arith.constant 0 : index
    %c9 = arith.constant 9 : index
    %94 = vector.load %arg9[%c0_40, %c9] : memref<32x11xf32, #tpu.memory_space<vmem>>, vector<32x1xf32>
    %c0_41 = arith.constant 0 : index
    %c0_42 = arith.constant 0 : index
    %95 = vector.load %arg2[%c0_41, %c0_42] : memref<32x128xf32, #tpu.memory_space<vmem>>, vector<32x128xf32>
    %96 = vector.broadcast %90 : vector<1x128xf32> to vector<32x128xf32>
    %97 = arith.mulf %95, %96 : vector<32x128xf32>
    %c0_43 = arith.constant 0 : index
    %c0_44 = arith.constant 0 : index
    %c0_45 = arith.constant 0 : index
    %98 = vector.load %arg6[%c0_43, %c0_44, %c0_45] : memref<1x96x32xbf16, #tpu.memory_space<vmem>>, vector<1x96x32xbf16>
    %99 = vector.shape_cast %98 : vector<1x96x32xbf16> to vector<96x32xbf16>
    %100 = arith.truncf %89 : vector<32x128xf32> to vector<32x128xbf16>
    %cst_46 = arith.constant dense<0.000000e+00> : vector<96x128xf32>
    %101 = tpu.matmul %99, %100, %cst_46 {dimension_numbers = #tpu.dot_dimension_numbers<[1], [0], [0], [1], [0, 0, 1, 1], [], []>} : vector<96x32xbf16>, vector<32x128xbf16>, vector<96x128xf32> -> vector<96x128xf32>
    %c0_47 = arith.constant 0 : index
    %c0_48 = arith.constant 0 : index
    %c0_49 = arith.constant 0 : index
    %102 = vector.load %arg7[%c0_47, %c0_48, %c0_49] : memref<1x96x32xbf16, #tpu.memory_space<vmem>>, vector<1x96x32xbf16>
    %103 = vector.shape_cast %102 : vector<1x96x32xbf16> to vector<96x32xbf16>
    %104 = arith.truncf %97 : vector<32x128xf32> to vector<32x128xbf16>
    %cst_50 = arith.constant dense<0.000000e+00> : vector<96x128xf32>
    %105 = tpu.matmul %103, %104, %cst_50 {dimension_numbers = #tpu.dot_dimension_numbers<[1], [0], [0], [1], [0, 0, 1, 1], [], []>} : vector<96x32xbf16>, vector<32x128xbf16>, vector<96x128xf32> -> vector<96x128xf32>
    %106 = vector.extract_strided_slice %101 {offsets = [0, 0], sizes = [32, 128], strides = [1, 1]} : vector<96x128xf32> to vector<32x128xf32>
    %107 = vector.extract_strided_slice %105 {offsets = [0, 0], sizes = [32, 128], strides = [1, 1]} : vector<96x128xf32> to vector<32x128xf32>
    %108 = arith.addf %106, %107 : vector<32x128xf32>
    %109 = vector.broadcast %91 : vector<32x1xf32> to vector<32x128xf32>
    %110 = arith.addf %108, %109 : vector<32x128xf32>
    %111 = arith.negf %110 : vector<32x128xf32>
    %112 = math.exp %111 : vector<32x128xf32>
    %cst_51 = arith.constant 1.000000e+00 : f32
    %113 = vector.broadcast %cst_51 : f32 to vector<32x128xf32>
    %114 = arith.addf %113, %112 : vector<32x128xf32>
    %115 = arith.divf %113, %114 : vector<32x128xf32>
    %116 = vector.extract_strided_slice %101 {offsets = [32, 0], sizes = [32, 128], strides = [1, 1]} : vector<96x128xf32> to vector<32x128xf32>
    %117 = vector.extract_strided_slice %105 {offsets = [32, 0], sizes = [32, 128], strides = [1, 1]} : vector<96x128xf32> to vector<32x128xf32>
    %118 = arith.addf %116, %117 : vector<32x128xf32>
    %119 = vector.broadcast %92 : vector<32x1xf32> to vector<32x128xf32>
    %120 = arith.addf %118, %119 : vector<32x128xf32>
    %121 = arith.negf %120 : vector<32x128xf32>
    %122 = math.exp %121 : vector<32x128xf32>
    %cst_52 = arith.constant 1.000000e+00 : f32
    %123 = vector.broadcast %cst_52 : f32 to vector<32x128xf32>
    %124 = arith.addf %123, %122 : vector<32x128xf32>
    %125 = arith.divf %123, %124 : vector<32x128xf32>
    %126 = vector.extract_strided_slice %101 {offsets = [64, 0], sizes = [32, 128], strides = [1, 1]} : vector<96x128xf32> to vector<32x128xf32>
    %127 = vector.broadcast %93 : vector<32x1xf32> to vector<32x128xf32>
    %128 = arith.addf %126, %127 : vector<32x128xf32>
    %129 = vector.extract_strided_slice %105 {offsets = [64, 0], sizes = [32, 128], strides = [1, 1]} : vector<96x128xf32> to vector<32x128xf32>
    %130 = vector.broadcast %94 : vector<32x1xf32> to vector<32x128xf32>
    %131 = arith.addf %129, %130 : vector<32x128xf32>
    %132 = arith.mulf %115, %131 : vector<32x128xf32>
    %133 = arith.addf %128, %132 : vector<32x128xf32>
    %134 = math.tanh %133 : vector<32x128xf32>
    %cst_53 = arith.constant 1.000000e+00 : f32
    %135 = vector.broadcast %cst_53 : f32 to vector<32x128xf32>
    %136 = arith.subf %135, %125 : vector<32x128xf32>
    %137 = arith.mulf %136, %134 : vector<32x128xf32>
    %138 = arith.mulf %125, %97 : vector<32x128xf32>
    %139 = arith.addf %137, %138 : vector<32x128xf32>
    %c0_54 = arith.constant 0 : index
    %c0_55 = arith.constant 0 : index
    %140 = vector.load %arg12[%c0_54, %c0_55] : memref<32x128xf32, #tpu.memory_space<vmem>>, vector<32x128xf32>
    tpu.vector_store %arg12[%c0_54, %c0_55], %139 {strides = array<i32>} : memref<32x128xf32, #tpu.memory_space<vmem>>, vector<32x128xf32>,
    %cst_56 = arith.constant dense<0.000000e+00> : vector<128xf32>
    %141 = vector.multi_reduction <add>, %139, %cst_56 [0] : vector<32x128xf32> to vector<128xf32>
    %142 = vector.shape_cast %141 : vector<128xf32> to vector<1x128xf32>
    %cst_57 = arith.constant 3.200000e+01 : f32
    %143 = vector.broadcast %cst_57 : f32 to vector<1x128xf32>
    %144 = arith.divf %142, %143 : vector<1x128xf32>
    %145 = vector.broadcast %144 : vector<1x128xf32> to vector<32x128xf32>
    %146 = arith.subf %139, %145 : vector<32x128xf32>
    %147 = arith.mulf %146, %146 : vector<32x128xf32>
    %cst_58 = arith.constant dense<0.000000e+00> : vector<128xf32>
    %148 = vector.multi_reduction <add>, %147, %cst_58 [0] : vector<32x128xf32> to vector<128xf32>
    %149 = vector.shape_cast %148 : vector<128xf32> to vector<1x128xf32>
    %cst_59 = arith.constant 3.200000e+01 : f32
    %150 = vector.broadcast %cst_59 : f32 to vector<1x128xf32>
    %151 = arith.divf %149, %150 : vector<1x128xf32>
    %152 = vector.broadcast %144 : vector<1x128xf32> to vector<32x128xf32>
    %153 = arith.subf %139, %152 : vector<32x128xf32>
    %cst_60 = arith.constant 9.99999974E-6 : f32
    %154 = vector.broadcast %cst_60 : f32 to vector<1x128xf32>
    %155 = arith.addf %151, %154 : vector<1x128xf32>
    %156 = math.rsqrt %155 : vector<1x128xf32>
    %157 = vector.broadcast %156 : vector<1x128xf32> to vector<32x128xf32>
    %158 = arith.mulf %153, %157 : vector<32x128xf32>
    %c0_61 = arith.constant 0 : index
    %c10 = arith.constant 10 : index
    %159 = vector.load %arg9[%c0_61, %c10] : memref<32x11xf32, #tpu.memory_space<vmem>>, vector<32x1xf32>
    %160 = vector.broadcast %159 : vector<32x1xf32> to vector<32x128xf32>
    %161 = arith.mulf %158, %160 : vector<32x128xf32>
    %cst_62 = arith.constant dense<0.000000e+00> : vector<128xf32>
    %162 = vector.multi_reduction <add>, %161, %cst_62 [0] : vector<32x128xf32> to vector<128xf32>
    %163 = vector.shape_cast %162 : vector<128xf32> to vector<1x128xf32>
    %c0_63 = arith.constant 0 : index
    %c0_64 = arith.constant 0 : index
    %164 = vector.load %arg10[%c0_63, %c0_64] : memref<1x1xf32, #tpu.memory_space<vmem>>, vector<1x1xf32>
    %165 = vector.broadcast %164 : vector<1x1xf32> to vector<1x128xf32>
    %166 = arith.addf %163, %165 : vector<1x128xf32>
    %c0_65 = arith.constant 0 : index
    %c0_66 = arith.constant 0 : index
    %167 = vector.load %arg11[%c0_65, %c0_66] : memref<1x128xf32, #tpu.memory_space<vmem>>, vector<1x128xf32>
    tpu.vector_store %arg11[%c0_65, %c0_66], %166 {strides = array<i32>} : memref<1x128xf32, #tpu.memory_space<vmem>>, vector<1x128xf32>,
    return
  }
  func.func @transform_0(%arg0: i32) -> (i32, i32) {
    %c0_i32 = arith.constant 0 : i32
    %c0_i32_0 = arith.constant 0 : i32
    return %c0_i32, %arg0 : i32, i32
  }
  func.func @transform_1(%arg0: i32) -> (i32, i32) {
    %c0_i32 = arith.constant 0 : i32
    %c0_i32_0 = arith.constant 0 : i32
    return %c0_i32, %arg0 : i32, i32
  }
  func.func @transform_2(%arg0: i32) -> (i32, i32) {
    %c0_i32 = arith.constant 0 : i32
    %c0_i32_0 = arith.constant 0 : i32
    return %c0_i32, %arg0 : i32, i32
  }
  func.func @transform_3(%arg0: i32) -> (i32, i32) {
    %c0_i32 = arith.constant 0 : i32
    %c0_i32_0 = arith.constant 0 : i32
    %c0_i32_1 = arith.constant 0 : i32
    return %c0_i32, %c0_i32_0 : i32, i32
  }
  func.func @transform_4(%arg0: i32) -> (i32, i32, i32) {
    %c0_i32 = arith.constant 0 : i32
    %c0_i32_0 = arith.constant 0 : i32
    %c0_i32_1 = arith.constant 0 : i32
    %c0_i32_2 = arith.constant 0 : i32
    return %c0_i32, %c0_i32_0, %c0_i32_1 : i32, i32, i32
  }
  func.func @transform_5(%arg0: i32) -> (i32, i32, i32) {
    %c0_i32 = arith.constant 0 : i32
    %c0_i32_0 = arith.constant 0 : i32
    %c0_i32_1 = arith.constant 0 : i32
    %c0_i32_2 = arith.constant 0 : i32
    return %c0_i32, %c0_i32_0, %c0_i32_1 : i32, i32, i32
  }
  func.func @transform_6(%arg0: i32) -> (i32, i32, i32) {
    %c0_i32 = arith.constant 0 : i32
    %c0_i32_0 = arith.constant 0 : i32
    %c0_i32_1 = arith.constant 0 : i32
    %c0_i32_2 = arith.constant 0 : i32
    return %c0_i32, %c0_i32_0, %c0_i32_1 : i32, i32, i32
  }
  func.func @transform_7(%arg0: i32) -> (i32, i32) {
    %c0_i32 = arith.constant 0 : i32
    %c0_i32_0 = arith.constant 0 : i32
    %c0_i32_1 = arith.constant 0 : i32
    return %c0_i32, %c0_i32_0 : i32, i32
  }
  func.func @transform_8(%arg0: i32) -> (i32, i32) {
    %c0_i32 = arith.constant 0 : i32
    %c0_i32_0 = arith.constant 0 : i32
    %c0_i32_1 = arith.constant 0 : i32
    return %c0_i32, %c0_i32_0 : i32, i32
  }
  func.func @transform_9(%arg0: i32) -> (i32, i32) {
    %c0_i32 = arith.constant 0 : i32
    %c0_i32_0 = arith.constant 0 : i32
    %c0_i32_1 = arith.constant 0 : i32
    return %c0_i32, %c0_i32_0 : i32, i32
  }
  func.func @transform_10(%arg0: i32) -> (i32, i32) {
    %c0_i32 = arith.constant 0 : i32
    %c0_i32_0 = arith.constant 0 : i32
    return %c0_i32, %arg0 : i32, i32
  }
  func.func @transform_11(%arg0: i32) -> (i32, i32) {
    %c0_i32 = arith.constant 0 : i32
    %c0_i32_0 = arith.constant 0 : i32
    return %c0_i32, %arg0 : i32, i32
  }
}

</mosaic_0001>

<llo_original>
// kernel: r_critic_forward.1
$region0: #{r_critic_forward.1}
  #allocation0 [shape = 'u32[]', space=smem, size = 0x4, offset = 0x4, fixed_abs, tag = 'smem constant byte address 0x4 - core index']
  #allocation1 [shape = 'u32[72,128]{1,0:T(1,128)}', space=vmem, size = 0x9000, scoped, tag = 'internal scratch']
  #allocation2 [shape = 'f32[1,1]{1,0:T(1,128)S(1)}', space=vmem, size = 0x200, scoped, tag = 'scoped memory for r_critic_forward.1']
  %s0 = inlined_call_operand.vmem [shape: f32[24,128], index: 0, kind: input, shape index: {}]
  %s1 = inlined_call_operand.vmem [shape: f32[32,128], index: 1, kind: input, shape index: {}]
  %s2 = inlined_call_operand.vmem [shape: f32[1,128], index: 2, kind: input, shape index: {}]
  %s3 = inlined_call_operand.vmem [shape: bf16[32,24], index: 3, kind: input, shape index: {}]
  %s4 = inlined_call_operand.vmem [shape: bf16[1,32,32], index: 4, kind: input, shape index: {}]
  %s5 = inlined_call_operand.vmem [shape: bf16[1,96,32], index: 5, kind: input, shape index: {}]
  %s6 = inlined_call_operand.vmem [shape: bf16[1,96,32], index: 6, kind: input, shape index: {}]
  %s7 = inlined_call_operand.vmem [shape: f32[24,2], index: 7, kind: input, shape index: {}]
  %s8 = inlined_call_operand.vmem [shape: f32[32,11], index: 8, kind: input, shape index: {}]
  %s9 = inlined_call_operand.<no memory space> [shape: f32[1,1], index: 9, kind: input, shape index: {}]
  %s10 = inlined_call_operand.vmem [shape: f32[1,128], index: 10, kind: output, shape index: {0}]
  %s11 = inlined_call_operand.vmem [shape: f32[32,128], index: 11, kind: output, shape index: {1}]
  %12 = xla_tuple %s10, %s11
  %s13 = sld [smem:[#allocation0]]
  $region58: #{r_critic_forward.1} parent=0
    _
  %s15 = ssub.s32 1, %s13
  %s16 = scalar_select 0, %s15, %s13
  %v17 = vstv %s9
  %18 = vst [vmem:[#allocation2] sm:$0x1] %v17
  // Predicated region
  $region2: #{r_critic_forward.1} parent=0 // pred_check
    _
  $region3: #{r_critic_forward.1} parent=0 // pred_check_branch
    %20 = sbr.rel (0) target = $region5
  $region4: #{r_critic_forward.1} parent=0 // pred_region
    _
  $region5: #{r_critic_forward.1} parent=0 // pred_fallthru
    _
  // Predicated region
  $region6: #{r_critic_forward.1} parent=0 // pred_check
    _
  $region7: #{r_critic_forward.1} parent=0 // pred_check_branch
    %22 = sbr.rel (0) target = $region9
  $region8: #{r_critic_forward.1} parent=0 // pred_region
    _
  $region9: #{r_critic_forward.1} parent=0 // pred_fallthru
    _
  // Predicated region
  $region10: #{r_critic_forward.1} parent=0 // pred_check
    _
  $region11: #{r_critic_forward.1} parent=0 // pred_check_branch
    %24 = sbr.rel (0) target = $region13
  $region12: #{r_critic_forward.1} parent=0 // pred_region
    _
  $region13: #{r_critic_forward.1} parent=0 // pred_fallthru
    _
  // Predicated region
  $region14: #{r_critic_forward.1} parent=0 // pred_check
    _
  $region15: #{r_critic_forward.1} parent=0 // pred_check_branch
    %26 = sbr.rel (0) target = $region17
  $region16: #{r_critic_forward.1} parent=0 // pred_region
    _
  $region17: #{r_critic_forward.1} parent=0 // pred_fallthru
    _
  // Predicated region
  $region18: #{r_critic_forward.1} parent=0 // pred_check
    _
  $region19: #{r_critic_forward.1} parent=0 // pred_check_branch
    %28 = sbr.rel (0) target = $region21
  $region20: #{r_critic_forward.1} parent=0 // pred_region
    _
  $region21: #{r_critic_forward.1} parent=0 // pred_fallthru
    _
  // Predicated region
  $region22: #{r_critic_forward.1} parent=0 // pred_check
    _
  $region23: #{r_critic_forward.1} parent=0 // pred_check_branch
    %30 = sbr.rel (0) target = $region25
  $region24: #{r_critic_forward.1} parent=0 // pred_region
    _
  $region25: #{r_critic_forward.1} parent=0 // pred_fallthru
    _
  // Predicated region
  $region26: #{r_critic_forward.1} parent=0 // pred_check
    _
  $region27: #{r_critic_forward.1} parent=0 // pred_check_branch
    %32 = sbr.rel (0) target = $region29
  $region28: #{r_critic_forward.1} parent=0 // pred_region
    _
  $region29: #{r_critic_forward.1} parent=0 // pred_fallthru
    _
  // Predicated region
  $region30: #{r_critic_forward.1} parent=0 // pred_check
    _
  $region31: #{r_critic_forward.1} parent=0 // pred_check_branch
    %34 = sbr.rel (0) target = $region33
  $region32: #{r_critic_forward.1} parent=0 // pred_region
    _
  $region33: #{r_critic_forward.1} parent=0 // pred_fallthru
    _
  // Predicated region
  $region34: #{r_critic_forward.1} parent=0 // pred_check
    _
  $region35: #{r_critic_forward.1} parent=0 // pred_check_branch
    %36 = sbr.rel (0) target = $region37
  $region36: #{r_critic_forward.1} parent=0 // pred_region
    _
  $region37: #{r_critic_forward.1} parent=0 // pred_fallthru
    _
  // Predicated region
  $region38: #{r_critic_forward.1} parent=0 // pred_check
    _
  $region39: #{r_critic_forward.1} parent=0 // pred_check_branch
    %38 = sbr.rel (0) target = $region41
  $region40: #{r_critic_forward.1} parent=0 // pred_region
    _
  $region41: #{r_critic_forward.1} parent=0 // pred_fallthru
    _
  %v40 = vld [vmem:[%s0] sm:$0xff]
  %v41 = vld [vmem:[%s0 + $0x8] sm:$0xff]
  %v42 = vld [vmem:[%s0 + $0x10] sm:$0xff]
  %v43 = vld [vmem:[%s7] sm:$0xff]
  %v44 = vld [vmem:[%s7 + $0x8] sm:$0xff]
  %v45 = vld [vmem:[%s7 + $0x10] sm:$0xff]
  %v46 = vadd.f32 %v40, %v41
  %v47 = vadd.f32 %v46, %v42
  %v48 = vrot.slane %v47, 4
  %v49 = vadd.f32 %v47, %v48
  %v50 = vrot.slane %v49, 2
  %v51 = vadd.f32 %v49, %v50
  %v52 = vrot.slane %v51, 1
  %v53 = vadd.f32 %v51, %v52
  %v54 = vrcp.pop 24.0
  %v55 = vmul.f32 24.0, %v54
  %v56 = vsub.f32 1.0, %v55
  %v57 = vmul.f32 %v54, %v56
  %v58 = vadd.f32 %v54, %v57
  %vm59 = vweird.f32 %v54
  %v60 = vsel %vm59, %v54, %v58
  %v61 = vmul.f32 %v53, %v60
  %v62 = vsub.f32 %v40, %v61
  %v63 = vsub.f32 %v41, %v61
  %v64 = vsub.f32 %v42, %v61
  %v65 = vmul.f32 %v62, %v62
  %v66 = vmul.f32 %v63, %v63
  %v67 = vmul.f32 %v64, %v64
  %v68 = vadd.f32 %v65, %v66
  %v69 = vadd.f32 %v68, %v67
  %v70 = vrot.slane %v69, 4
  %v71 = vadd.f32 %v69, %v70
  %v72 = vrot.slane %v71, 2
  %v73 = vadd.f32 %v71, %v72
  %v74 = vrot.slane %v73, 1
  %v75 = vadd.f32 %v73, %v74
  %v76 = vmul.f32 %v75, %v60
  %v77 = vadd.f32 %v76, 1e-05
  %v78 = vrsqrt.pop %v77
  %v79 = vmul.f32 %v78, %v77
  %v80 = vmul.f32 %v79, %v78
  %v81 = vmul.f32 0.5, %v80
  %v82 = vsub.f32 1.5, %v81
  %v83 = vmul.f32 %v78, %v82
  %vm84 = vweird.f32 %v77
  %vm85 = vweird.f32 %v78
  %vm86 = vmor %vm84, %vm85
  %v87 = vsel %vm86, %v78, %v83
  %v88 = vmul.f32 %v62, %v87
  %v89 = vmul.f32 %v63, %v87
  %v90 = vmul.f32 %v64, %v87
  %92 = vset.pattern.permute.xlu0 0
  %93 = vperm.xlu0 %92, %v43
  %v94 = vpop.permute.xlu0 %93
  %97 = vset.pattern.permute.xlu0 0
  %98 = vperm.xlu0 %97, %v44
  %v99 = vpop.permute.xlu0 %98
  %102 = vset.pattern.permute.xlu0 0
  %103 = vperm.xlu0 %102, %v45
  %v104 = vpop.permute.xlu0 %103
  %v106 = vmul.f32 %v88, %v94
  %v107 = vmul.f32 %v89, %v99
  %v108 = vmul.f32 %v90, %v104
  %109 = vset.pattern.permute.xlu0 1
  %110 = vperm.xlu0 %109, %v43
  %v111 = vpop.permute.xlu0 %110
  %113 = vset.pattern.permute.xlu0 1
  %114 = vperm.xlu0 %113, %v44
  %v115 = vpop.permute.xlu0 %114
  %117 = vset.pattern.permute.xlu0 1
  %118 = vperm.xlu0 %117, %v45
  %v119 = vpop.permute.xlu0 %118
  %v121 = vadd.f32 %v106, %v111
  %v122 = vadd.f32 %v107, %v115
  %v123 = vadd.f32 %v108, %v119
  %v124 = vld [vmem:[%s3] sm:$0xf]
  %v125 = vld [vmem:[%s3 + $0x4] sm:$0xf]
  %v126 = vld [vmem:[%s3 + $0x8] sm:$0xf]
  %v127 = vld [vmem:[%s3 + $0xc] sm:$0xf]
  %v128 = vpack.c.bf16 %v122, %v121
  %v129 = vpack.c.bf16 %v123, %v123
  %v130 = vld [vmem:[%s8] sm:$0xff]
  %v131 = vld [vmem:[%s8 + $0x8] sm:$0xff]
  %v132 = vld [vmem:[%s8 + $0x10] sm:$0xff]
  %v133 = vld [vmem:[%s8 + $0x18] sm:$0xff]
  %135 = vset.pattern.permute.xlu0 0
  %136 = vperm.xlu0 %135, %v130
  %v137 = vpop.permute.xlu0 %136
  %140 = vset.pattern.permute.xlu0 0
  %141 = vperm.xlu0 %140, %v131
  %v142 = vpop.permute.xlu0 %141
  %145 = vset.pattern.permute.xlu0 0
  %146 = vperm.xlu0 %145, %v132
  %v147 = vpop.permute.xlu0 %146
  %150 = vset.pattern.permute.xlu0 0
  %151 = vperm.xlu0 %150, %v133
  %v152 = vpop.permute.xlu0 %151
  %v158 = vunpack.c.l.b16 %v124
  %v159 = vunpack.c.l.b16 %v125
  %v160 = vunpack.c.l.b16 %v126
  %v161 = vunpack.c.l.b16 %v127
  %v162 = vpack.c.b16 %v159, %v158
  %v163 = vpack.c.b16 %v161, %v160
  %vm164 = vcmask 195584
  %v166 = vsel %vm164, %v162, 0
  %v169 = vsel %vm164, %v163, 0
  %vm171 = vcmask 1043456
  %v173 = vsel %vm171, %v129, 0
  %175 = vmatpush.bf16.msra.mxu0 0
  %176 = vmatpush.bf16.msra.mxu0 0
  %177 = vmatpush.bf16.msra.mxu0 0
  %178 = vmatpush.bf16.msra.mxu0 0
  %179 = vmatpush.bf16.msra.mxu0 0
  %180 = vmatpush.bf16.msra.mxu0 0
  %181 = vmatpush.bf16.msra.mxu0 %v173
  %182 = vmatpush.bf16.msra.mxu0 %v128
  %183 = vmatmul.bf16.gmra.mxu0 %v166
  %v184 = vpop.f32.mrf.mxu0
  %v185 = vadd.f32 %v137, %v184
  %v186 = vpop.f32.mrf.mxu0
  %v187 = vadd.f32 %v142, %v186
  %188 = vmatmul.bf16.gmra.mxu0 %v169
  %v189 = vpop.f32.mrf.mxu0
  %v190 = vadd.f32 %v147, %v189
  %v191 = vpop.f32.mrf.mxu0
  %v192 = vadd.f32 %v152, %v191
  %193 = vdwg.mxu0
  %v194 = vmax.f32 %v185, 0.0
  %v195 = vmax.f32 %v187, 0.0
  %v196 = vmax.f32 %v190, 0.0
  %v197 = vmax.f32 %v192, 0.0
  %v198 = vadd.f32 %v194, %v195
  %v199 = vadd.f32 %v198, %v196
  %v200 = vadd.f32 %v199, %v197
  %v201 = vrot.slane %v200, 4
  %v202 = vadd.f32 %v200, %v201
  %v203 = vrot.slane %v202, 2
  %v204 = vadd.f32 %v202, %v203
  %v205 = vrot.slane %v204, 1
  %v206 = vadd.f32 %v204, %v205
  %v207 = vrcp.pop 32.0
  %v208 = vmul.f32 32.0, %v207
  %v209 = vsub.f32 1.0, %v208
  %v210 = vmul.f32 %v207, %v209
  %v211 = vadd.f32 %v207, %v210
  %vm212 = vweird.f32 %v207
  %v213 = vsel %vm212, %v207, %v211
  %v214 = vmul.f32 %v206, %v213
  %v215 = vsub.f32 %v194, %v214
  %v216 = vsub.f32 %v195, %v214
  %v217 = vsub.f32 %v196, %v214
  %v218 = vsub.f32 %v197, %v214
  %v219 = vmul.f32 %v215, %v215
  %v220 = vmul.f32 %v216, %v216
  %v221 = vmul.f32 %v217, %v217
  %v222 = vmul.f32 %v218, %v218
  %v223 = vadd.f32 %v219, %v220
  %v224 = vadd.f32 %v223, %v221
  %v225 = vadd.f32 %v224, %v222
  %v226 = vrot.slane %v225, 4
  %v227 = vadd.f32 %v225, %v226
  %v228 = vrot.slane %v227, 2
  %v229 = vadd.f32 %v227, %v228
  %v230 = vrot.slane %v229, 1
  %v231 = vadd.f32 %v229, %v230
  %v232 = vmul.f32 %v231, %v213
  %v233 = vadd.f32 %v232, 1e-05
  %v234 = vrsqrt.pop %v233
  %v235 = vmul.f32 %v234, %v233
  %v236 = vmul.f32 %v235, %v234
  %v237 = vmul.f32 0.5, %v236
  %v238 = vsub.f32 1.5, %v237
  %v239 = vmul.f32 %v234, %v238
  %vm240 = vweird.f32 %v233
  %vm241 = vweird.f32 %v234
  %vm242 = vmor %vm240, %vm241
  %v243 = vsel %vm242, %v234, %v239
  %v244 = vmul.f32 %v215, %v243
  %v245 = vmul.f32 %v216, %v243
  %v246 = vmul.f32 %v217, %v243
  %v247 = vmul.f32 %v218, %v243
  %248 = vset.pattern.permute.xlu0 1
  %249 = vperm.xlu0 %248, %v130
  %v250 = vpop.permute.xlu0 %249
  %252 = vset.pattern.permute.xlu0 1
  %253 = vperm.xlu0 %252, %v131
  %v254 = vpop.permute.xlu0 %253
  %256 = vset.pattern.permute.xlu0 1
  %257 = vperm.xlu0 %256, %v132
  %v258 = vpop.permute.xlu0 %257
  %260 = vset.pattern.permute.xlu0 1
  %261 = vperm.xlu0 %260, %v133
  %v262 = vpop.permute.xlu0 %261
  %v264 = vmul.f32 %v244, %v250
  %v265 = vmul.f32 %v245, %v254
  %v266 = vmul.f32 %v246, %v258
  %v267 = vmul.f32 %v247, %v262
  %268 = vset.pattern.permute.xlu0 2
  %269 = vperm.xlu0 %268, %v130
  %v270 = vpop.permute.xlu0 %269
  %272 = vset.pattern.permute.xlu0 2
  %273 = vperm.xlu0 %272, %v131
  %v274 = vpop.permute.xlu0 %273
  %276 = vset.pattern.permute.xlu0 2
  %277 = vperm.xlu0 %276, %v132
  %v278 = vpop.permute.xlu0 %277
  %280 = vset.pattern.permute.xlu0 2
  %281 = vperm.xlu0 %280, %v133
  %v282 = vpop.permute.xlu0 %281
  %v284 = vadd.f32 %v264, %v270
  %v285 = vadd.f32 %v265, %v274
  %v286 = vadd.f32 %v266, %v278
  %v287 = vadd.f32 %v267, %v282
  %v288 = vld [vmem:[%s4] sm:$0xf]
  %v289 = vld [vmem:[%s4 + $0x4] sm:$0xf]
  %v290 = vld [vmem:[%s4 + $0x8] sm:$0xf]
  %v291 = vld [vmem:[%s4 + $0xc] sm:$0xf]
  %v292 = vpack.c.bf16 %v285, %v284
  %v293 = vpack.c.bf16 %v287, %v286
  %294 = vset.pattern.permute.xlu0 3
  %295 = vperm.xlu0 %294, %v130
  %v296 = vpop.permute.xlu0 %295
  %298 = vset.pattern.permute.xlu0 3
  %299 = vperm.xlu0 %298, %v131
  %v300 = vpop.permute.xlu0 %299
  %302 = vset.pattern.permute.xlu0 3
  %303 = vperm.xlu0 %302, %v132
  %v304 = vpop.permute.xlu0 %303
  %306 = vset.pattern.permute.xlu0 3
  %307 = vperm.xlu0 %306, %v133
  %v308 = vpop.permute.xlu0 %307
  %v314 = vunpack.c.l.b16 %v288
  %v315 = vunpack.c.l.b16 %v289
  %v316 = vunpack.c.l.b16 %v290
  %v317 = vunpack.c.l.b16 %v291
  %v318 = vpack.c.b16 %v315, %v314
  %v319 = vpack.c.b16 %v317, %v316
  %vm320 = vcmask 261120
  %v322 = vsel %vm320, %v318, 0
  %v325 = vsel %vm320, %v319, 0
  %327 = vmatpush.bf16.msra.mxu0 0
  %328 = vmatpush.bf16.msra.mxu0 0
  %329 = vmatpush.bf16.msra.mxu0 0
  %330 = vmatpush.bf16.msra.mxu0 0
  %331 = vmatpush.bf16.msra.mxu0 0
  %332 = vmatpush.bf16.msra.mxu0 0
  %333 = vmatpush.bf16.msra.mxu0 %v293
  %334 = vmatpush.bf16.msra.mxu0 %v292
  %335 = vmatmul.bf16.gmra.mxu0 %v322
  %v336 = vpop.f32.mrf.mxu0
  %v337 = vadd.f32 %v296, %v336
  %v338 = vpop.f32.mrf.mxu0
  %v339 = vadd.f32 %v300, %v338
  %340 = vmatmul.bf16.gmra.mxu0 %v325
  %v341 = vpop.f32.mrf.mxu0
  %v342 = vadd.f32 %v304, %v341
  %v343 = vpop.f32.mrf.mxu0
  %v344 = vadd.f32 %v308, %v343
  %345 = vdwg.mxu0
  %v346 = vmax.f32 %v337, 0.0
  %v347 = vmax.f32 %v339, 0.0
  %v348 = vmax.f32 %v342, 0.0
  %v349 = vmax.f32 %v344, 0.0
  %v350 = vadd.f32 %v346, %v347
  %v351 = vadd.f32 %v350, %v348
  %v352 = vadd.f32 %v351, %v349
  %v353 = vrot.slane %v352, 4
  %v354 = vadd.f32 %v352, %v353
  %v355 = vrot.slane %v354, 2
  %v356 = vadd.f32 %v354, %v355
  %v357 = vrot.slane %v356, 1
  %v358 = vadd.f32 %v356, %v357
  %v359 = vmul.f32 %v358, %v213
  %v360 = vsub.f32 %v346, %v359
  %v361 = vsub.f32 %v347, %v359
  %v362 = vsub.f32 %v348, %v359
  %v363 = vsub.f32 %v349, %v359
  %v364 = vmul.f32 %v360, %v360
  %v365 = vmul.f32 %v361, %v361
  %v366 = vmul.f32 %v362, %v362
  %v367 = vmul.f32 %v363, %v363
  %v368 = vadd.f32 %v364, %v365
  %v369 = vadd.f32 %v368, %v366
  %v370 = vadd.f32 %v369, %v367
  %v371 = vrot.slane %v370, 4
  %v372 = vadd.f32 %v370, %v371
  %v373 = vrot.slane %v372, 2
  %v374 = vadd.f32 %v372, %v373
  %v375 = vrot.slane %v374, 1
  %v376 = vadd.f32 %v374, %v375
  %v377 = vmul.f32 %v376, %v213
  %v378 = vadd.f32 %v377, 1e-05
  %v379 = vrsqrt.pop %v378
  %v380 = vmul.f32 %v379, %v378
  %v381 = vmul.f32 %v380, %v379
  %v382 = vmul.f32 0.5, %v381
  %v383 = vsub.f32 1.5, %v382
  %v384 = vmul.f32 %v379, %v383
  %vm385 = vweird.f32 %v378
  %vm386 = vweird.f32 %v379
  %vm387 = vmor %vm385, %vm386
  %v388 = vsel %vm387, %v379, %v384
  %v389 = vmul.f32 %v360, %v388
  %v390 = vmul.f32 %v361, %v388
  %v391 = vmul.f32 %v362, %v388
  %v392 = vmul.f32 %v363, %v388
  %393 = vset.pattern.permute.xlu0 4
  %394 = vperm.xlu0 %393, %v130
  %v395 = vpop.permute.xlu0 %394
  %397 = vset.pattern.permute.xlu0 4
  %398 = vperm.xlu0 %397, %v131
  %v399 = vpop.permute.xlu0 %398
  %401 = vset.pattern.permute.xlu0 4
  %402 = vperm.xlu0 %401, %v132
  %v403 = vpop.permute.xlu0 %402
  %405 = vset.pattern.permute.xlu0 4
  %406 = vperm.xlu0 %405, %v133
  %v407 = vpop.permute.xlu0 %406
  %v409 = vmul.f32 %v389, %v395
  %v410 = vmul.f32 %v390, %v399
  %v411 = vmul.f32 %v391, %v403
  %v412 = vmul.f32 %v392, %v407
  %413 = vset.pattern.permute.xlu0 5
  %414 = vperm.xlu0 %413, %v130
  %v415 = vpop.permute.xlu0 %414
  %417 = vset.pattern.permute.xlu0 5
  %418 = vperm.xlu0 %417, %v131
  %v419 = vpop.permute.xlu0 %418
  %421 = vset.pattern.permute.xlu0 5
  %422 = vperm.xlu0 %421, %v132
  %v423 = vpop.permute.xlu0 %422
  %425 = vset.pattern.permute.xlu0 5
  %426 = vperm.xlu0 %425, %v133
  %v427 = vpop.permute.xlu0 %426
  %v429 = vadd.f32 %v409, %v415
  %v430 = vadd.f32 %v410, %v419
  %v431 = vadd.f32 %v411, %v423
  %v432 = vadd.f32 %v412, %v427
  %v433 = vld [vmem:[%s2] sm:$0x1]
  %v434 = vld [vmem:[%s1] sm:$0xff]
  %v435 = vld [vmem:[%s1 + $0x8] sm:$0xff]
  %v436 = vld [vmem:[%s1 + $0x10] sm:$0xff]
  %v437 = vld [vmem:[%s1 + $0x18] sm:$0xff]
  %v439 = vperm.slane %v433, 0
  %v441 = vmul.f32 %v434, %v439
  %v442 = vmul.f32 %v435, %v439
  %v443 = vmul.f32 %v436, %v439
  %v444 = vmul.f32 %v437, %v439
  %v445 = vld [vmem:[%s5] sm:$0xf]
  %v446 = vld [vmem:[%s5 + $0x4] sm:$0xf]
  %v447 = vld [vmem:[%s5 + $0x8] sm:$0xf]
  %v448 = vld [vmem:[%s5 + $0xc] sm:$0xf]
  %v449 = vld [vmem:[%s5 + $0x10] sm:$0xf]
  %v450 = vld [vmem:[%s5 + $0x14] sm:$0xf]
  %v451 = vld [vmem:[%s5 + $0x18] sm:$0xf]
  %v452 = vld [vmem:[%s5 + $0x1c] sm:$0xf]
  %v453 = vld [vmem:[%s5 + $0x20] sm:$0xf]
  %v454 = vld [vmem:[%s5 + $0x24] sm:$0xf]
  %v455 = vld [vmem:[%s5 + $0x28] sm:$0xf]
  %v456 = vld [vmem:[%s5 + $0x2c] sm:$0xf]
  %v457 = vpack.c.bf16 %v430, %v429
  %v458 = vpack.c.bf16 %v432, %v431
  %v471 = vunpack.c.l.b16 %v445
  %v472 = vunpack.c.l.b16 %v446
  %v473 = vunpack.c.l.b16 %v447
  %v474 = vunpack.c.l.b16 %v448
  %v475 = vunpack.c.l.b16 %v449
  %v476 = vunpack.c.l.b16 %v450
  %v477 = vunpack.c.l.b16 %v451
  %v478 = vunpack.c.l.b16 %v452
  %v479 = vunpack.c.l.b16 %v453
  %v480 = vunpack.c.l.b16 %v454
  %v481 = vunpack.c.l.b16 %v455
  %v482 = vunpack.c.l.b16 %v456
  %v483 = vpack.c.b16 %v472, %v471
  %v484 = vpack.c.b16 %v474, %v473
  %v485 = vpack.c.b16 %v476, %v475
  %v486 = vpack.c.b16 %v478, %v477
  %v487 = vpack.c.b16 %v480, %v479
  %v488 = vpack.c.b16 %v482, %v481
  %v490 = vsel %vm320, %v483, 0
  %v493 = vsel %vm320, %v484, 0
  %v496 = vsel %vm320, %v485, 0
  %v499 = vsel %vm320, %v486, 0
  %v502 = vsel %vm320, %v487, 0
  %v505 = vsel %vm320, %v488, 0
  %507 = vmatpush.bf16.msra.mxu0 0
  %508 = vmatpush.bf16.msra.mxu0 0
  %509 = vmatpush.bf16.msra.mxu0 0
  %510 = vmatpush.bf16.msra.mxu0 0
  %511 = vmatpush.bf16.msra.mxu0 0
  %512 = vmatpush.bf16.msra.mxu0 0
  %513 = vmatpush.bf16.msra.mxu0 %v458
  %514 = vmatpush.bf16.msra.mxu0 %v457
  %515 = vmatmul.bf16.gmra.mxu0 %v490
  %v516 = vpop.f32.mrf.mxu0
  %v517 = vadd.f32 0.0, %v516
  %v518 = vpop.f32.mrf.mxu0
  %v519 = vadd.f32 0.0, %v518
  %520 = vmatmul.bf16.gmra.mxu0 %v493
  %v521 = vpop.f32.mrf.mxu0
  %v522 = vadd.f32 0.0, %v521
  %v523 = vpop.f32.mrf.mxu0
  %v524 = vadd.f32 0.0, %v523
  %525 = vmatmul.bf16.gmra.mxu0 %v496
  %v526 = vpop.f32.mrf.mxu0
  %v527 = vadd.f32 0.0, %v526
  %v528 = vpop.f32.mrf.mxu0
  %v529 = vadd.f32 0.0, %v528
  %530 = vmatmul.bf16.gmra.mxu0 %v499
  %v531 = vpop.f32.mrf.mxu0
  %v532 = vadd.f32 0.0, %v531
  %v533 = vpop.f32.mrf.mxu0
  %v534 = vadd.f32 0.0, %v533
  %535 = vmatmul.bf16.gmra.mxu0 %v502
  %v536 = vpop.f32.mrf.mxu0
  %v537 = vadd.f32 0.0, %v536
  %v538 = vpop.f32.mrf.mxu0
  %v539 = vadd.f32 0.0, %v538
  %540 = vmatmul.bf16.gmra.mxu0 %v505
  %v541 = vpop.f32.mrf.mxu0
  %v542 = vadd.f32 0.0, %v541
  %v543 = vpop.f32.mrf.mxu0
  %v544 = vadd.f32 0.0, %v543
  %545 = vdwg.mxu0
  %v546 = vld [vmem:[%s6] sm:$0xf]
  %v547 = vld [vmem:[%s6 + $0x4] sm:$0xf]
  %v548 = vld [vmem:[%s6 + $0x8] sm:$0xf]
  %v549 = vld [vmem:[%s6 + $0xc] sm:$0xf]
  %v550 = vld [vmem:[%s6 + $0x10] sm:$0xf]
  %v551 = vld [vmem:[%s6 + $0x14] sm:$0xf]
  %v552 = vld [vmem:[%s6 + $0x18] sm:$0xf]
  %v553 = vld [vmem:[%s6 + $0x1c] sm:$0xf]
  %v554 = vld [vmem:[%s6 + $0x20] sm:$0xf]
  %v555 = vld [vmem:[%s6 + $0x24] sm:$0xf]
  %v556 = vld [vmem:[%s6 + $0x28] sm:$0xf]
  %v557 = vld [vmem:[%s6 + $0x2c] sm:$0xf]
  %v558 = vpack.c.bf16 %v442, %v441
  %v559 = vpack.c.bf16 %v444, %v443
  %v572 = vunpack.c.l.b16 %v546
  %v573 = vunpack.c.l.b16 %v547
  %v574 = vunpack.c.l.b16 %v548
  %v575 = vunpack.c.l.b16 %v549
  %v576 = vunpack.c.l.b16 %v550
  %v577 = vunpack.c.l.b16 %v551
  %v578 = vunpack.c.l.b16 %v552
  %v579 = vunpack.c.l.b16 %v553
  %v580 = vunpack.c.l.b16 %v554
  %v581 = vunpack.c.l.b16 %v555
  %v582 = vunpack.c.l.b16 %v556
  %v583 = vunpack.c.l.b16 %v557
  %v584 = vpack.c.b16 %v573, %v572
  %v585 = vpack.c.b16 %v575, %v574
  %v586 = vpack.c.b16 %v577, %v576
  %v587 = vpack.c.b16 %v579, %v578
  %v588 = vpack.c.b16 %v581, %v580
  %v589 = vpack.c.b16 %v583, %v582
  %v591 = vsel %vm320, %v584, 0
  %v594 = vsel %vm320, %v585, 0
  %v597 = vsel %vm320, %v586, 0
  %v600 = vsel %vm320, %v587, 0
  %v603 = vsel %vm320, %v588, 0
  %v606 = vsel %vm320, %v589, 0
  %608 = vmatpush.bf16.msra.mxu0 0
  %609 = vmatpush.bf16.msra.mxu0 0
  %610 = vmatpush.bf16.msra.mxu0 0
  %611 = vmatpush.bf16.msra.mxu0 0
  %612 = vmatpush.bf16.msra.mxu0 0
  %613 = vmatpush.bf16.msra.mxu0 0
  %614 = vmatpush.bf16.msra.mxu0 %v559
  %615 = vmatpush.bf16.msra.mxu0 %v558
  %616 = vmatmul.bf16.gmra.mxu0 %v591
  %v617 = vpop.f32.mrf.mxu0
  %v618 = vadd.f32 0.0, %v617
  %v619 = vpop.f32.mrf.mxu0
  %v620 = vadd.f32 0.0, %v619
  %621 = vmatmul.bf16.gmra.mxu0 %v594
  %v622 = vpop.f32.mrf.mxu0
  %v623 = vadd.f32 0.0, %v622
  %v624 = vpop.f32.mrf.mxu0
  %v625 = vadd.f32 0.0, %v624
  %626 = vmatmul.bf16.gmra.mxu0 %v597
  %v627 = vpop.f32.mrf.mxu0
  %v628 = vadd.f32 0.0, %v627
  %v629 = vpop.f32.mrf.mxu0
  %v630 = vadd.f32 0.0, %v629
  %631 = vmatmul.bf16.gmra.mxu0 %v600
  %v632 = vpop.f32.mrf.mxu0
  %v633 = vadd.f32 0.0, %v632
  %v634 = vpop.f32.mrf.mxu0
  %v635 = vadd.f32 0.0, %v634
  %636 = vmatmul.bf16.gmra.mxu0 %v603
  %v637 = vpop.f32.mrf.mxu0
  %v638 = vadd.f32 0.0, %v637
  %v639 = vpop.f32.mrf.mxu0
  %v640 = vadd.f32 0.0, %v639
  %641 = vmatmul.bf16.gmra.mxu0 %v606
  %v642 = vpop.f32.mrf.mxu0
  %v643 = vadd.f32 0.0, %v642
  %v644 = vpop.f32.mrf.mxu0
  %v645 = vadd.f32 0.0, %v644
  %646 = vdwg.mxu0
  %v647 = vadd.f32 %v517, %v618
  %v648 = vadd.f32 %v519, %v620
  %v649 = vadd.f32 %v522, %v623
  %v650 = vadd.f32 %v524, %v625
  %651 = vset.pattern.permute.xlu0 6
  %652 = vperm.xlu0 %651, %v130
  %v653 = vpop.permute.xlu0 %652
  %655 = vset.pattern.permute.xlu0 6
  %656 = vperm.xlu0 %655, %v131
  %v657 = vpop.permute.xlu0 %656
  %659 = vset.pattern.permute.xlu0 6
  %660 = vperm.xlu0 %659, %v132
  %v661 = vpop.permute.xlu0 %660
  %663 = vset.pattern.permute.xlu0 6
  %664 = vperm.xlu0 %663, %v133
  %v665 = vpop.permute.xlu0 %664
  %v667 = vadd.f32 %v647, %v653
  %v668 = vadd.f32 %v648, %v657
  %v669 = vadd.f32 %v649, %v661
  %v670 = vadd.f32 %v650, %v665
  %v671 = vxor.u32 %v667, 2147483648
  %v672 = vxor.u32 %v668, 2147483648
  %v673 = vxor.u32 %v669, 2147483648
  %v674 = vxor.u32 %v670, 2147483648
  %v675 = vmul.f32 %v671, 1.442695
  %v676 = vpow.pop %v675
  %v677 = vmul.f32 %v672, 1.442695
  %v678 = vpow.pop %v677
  %v679 = vmul.f32 %v673, 1.442695
  %v680 = vpow.pop %v679
  %v681 = vmul.f32 %v674, 1.442695
  %v682 = vpow.pop %v681
  %v683 = vadd.f32 %v676, 1.0
  %v684 = vadd.f32 %v678, 1.0
  %v685 = vadd.f32 %v680, 1.0
  %v686 = vadd.f32 %v682, 1.0
  %v687 = vrcp.pop %v683
  %v688 = vmul.f32 %v683, %v687
  %v689 = vsub.f32 1.0, %v688
  %v690 = vmul.f32 %v687, %v689
  %v691 = vadd.f32 %v687, %v690
  %vm692 = vweird.f32 %v683
  %vm693 = vweird.f32 %v687
  %vm694 = vmor %vm692, %vm693
  %v695 = vsel %vm694, %v687, %v691
  %v696 = vand.u32 2147483647, %v683
  %vm697 = vcmp.eq.f32.partialorder %v696, 8.507059e+37
  %v698 = vand.u32 %v683, 2147483648
  %v699 = vor.u32 1.1754944e-38, %v698
  %v700 = vsel %vm697, %v699, %v695
  %v701 = vmul.f32 1.0, %v700
  %v702 = vrcp.pop %v684
  %v703 = vmul.f32 %v684, %v702
  %v704 = vsub.f32 1.0, %v703
  %v705 = vmul.f32 %v702, %v704
  %v706 = vadd.f32 %v702, %v705
  %vm707 = vweird.f32 %v684
  %vm708 = vweird.f32 %v702
  %vm709 = vmor %vm707, %vm708
  %v710 = vsel %vm709, %v702, %v706
  %v711 = vand.u32 2147483647, %v684
  %vm712 = vcmp.eq.f32.partialorder %v711, 8.507059e+37
  %v713 = vand.u32 %v684, 2147483648
  %v714 = vor.u32 1.1754944e-38, %v713
  %v715 = vsel %vm712, %v714, %v710
  %v716 = vmul.f32 1.0, %v715
  %v717 = vrcp.pop %v685
  %v718 = vmul.f32 %v685, %v717
  %v719 = vsub.f32 1.0, %v718
  %v720 = vmul.f32 %v717, %v719
  %v721 = vadd.f32 %v717, %v720
  %vm722 = vweird.f32 %v685
  %vm723 = vweird.f32 %v717
  %vm724 = vmor %vm722, %vm723
  %v725 = vsel %vm724, %v717, %v721
  %v726 = vand.u32 2147483647, %v685
  %vm727 = vcmp.eq.f32.partialorder %v726, 8.507059e+37
  %v728 = vand.u32 %v685, 2147483648
  %v729 = vor.u32 1.1754944e-38, %v728
  %v730 = vsel %vm727, %v729, %v725
  %v731 = vmul.f32 1.0, %v730
  %v732 = vrcp.pop %v686
  %v733 = vmul.f32 %v686, %v732
  %v734 = vsub.f32 1.0, %v733
  %v735 = vmul.f32 %v732, %v734
  %v736 = vadd.f32 %v732, %v735
  %vm737 = vweird.f32 %v686
  %vm738 = vweird.f32 %v732
  %vm739 = vmor %vm737, %vm738
  %v740 = vsel %vm739, %v732, %v736
  %v741 = vand.u32 2147483647, %v686
  %vm742 = vcmp.eq.f32.partialorder %v741, 8.507059e+37
  %v743 = vand.u32 %v686, 2147483648
  %v744 = vor.u32 1.1754944e-38, %v743
  %v745 = vsel %vm742, %v744, %v740
  %v746 = vmul.f32 1.0, %v745
  %v747 = vadd.f32 %v527, %v628
  %v748 = vadd.f32 %v529, %v630
  %v749 = vadd.f32 %v532, %v633
  %v750 = vadd.f32 %v534, %v635
  %751 = vset.pattern.permute.xlu0 7
  %752 = vperm.xlu0 %751, %v130
  %v753 = vpop.permute.xlu0 %752
  %755 = vset.pattern.permute.xlu0 7
  %756 = vperm.xlu0 %755, %v131
  %v757 = vpop.permute.xlu0 %756
  %759 = vset.pattern.permute.xlu0 7
  %760 = vperm.xlu0 %759, %v132
  %v761 = vpop.permute.xlu0 %760
  %763 = vset.pattern.permute.xlu0 7
  %764 = vperm.xlu0 %763, %v133
  %v765 = vpop.permute.xlu0 %764
  %v767 = vadd.f32 %v747, %v753
  %v768 = vadd.f32 %v748, %v757
  %v769 = vadd.f32 %v749, %v761
  %v770 = vadd.f32 %v750, %v765
  %v771 = vxor.u32 %v767, 2147483648
  %v772 = vxor.u32 %v768, 2147483648
  %v773 = vxor.u32 %v769, 2147483648
  %v774 = vxor.u32 %v770, 2147483648
  %v775 = vmul.f32 %v771, 1.442695
  %v776 = vpow.pop %v775
  %v777 = vmul.f32 %v772, 1.442695
  %v778 = vpow.pop %v777
  %v779 = vmul.f32 %v773, 1.442695
  %v780 = vpow.pop %v779
  %v781 = vmul.f32 %v774, 1.442695
  %v782 = vpow.pop %v781
  %v783 = vadd.f32 %v776, 1.0
  %v784 = vadd.f32 %v778, 1.0
  %v785 = vadd.f32 %v780, 1.0
  %v786 = vadd.f32 %v782, 1.0
  %v787 = vrcp.pop %v783
  %v788 = vmul.f32 %v783, %v787
  %v789 = vsub.f32 1.0, %v788
  %v790 = vmul.f32 %v787, %v789
  %v791 = vadd.f32 %v787, %v790
  %vm792 = vweird.f32 %v783
  %vm793 = vweird.f32 %v787
  %vm794 = vmor %vm792, %vm793
  %v795 = vsel %vm794, %v787, %v791
  %v796 = vand.u32 2147483647, %v783
  %vm797 = vcmp.eq.f32.partialorder %v796, 8.507059e+37
  %v798 = vand.u32 %v783, 2147483648
  %v799 = vor.u32 1.1754944e-38, %v798
  %v800 = vsel %vm797, %v799, %v795
  %v801 = vmul.f32 1.0, %v800
  %v802 = vrcp.pop %v784
  %v803 = vmul.f32 %v784, %v802
  %v804 = vsub.f32 1.0, %v803
  %v805 = vmul.f32 %v802, %v804
  %v806 = vadd.f32 %v802, %v805
  %vm807 = vweird.f32 %v784
  %vm808 = vweird.f32 %v802
  %vm809 = vmor %vm807, %vm808
  %v810 = vsel %vm809, %v802, %v806
  %v811 = vand.u32 2147483647, %v784
  %vm812 = vcmp.eq.f32.partialorder %v811, 8.507059e+37
  %v813 = vand.u32 %v784, 2147483648
  %v814 = vor.u32 1.1754944e-38, %v813
  %v815 = vsel %vm812, %v814, %v810
  %v816 = vmul.f32 1.0, %v815
  %v817 = vrcp.pop %v785
  %v818 = vmul.f32 %v785, %v817
  %v819 = vsub.f32 1.0, %v818
  %v820 = vmul.f32 %v817, %v819
  %v821 = vadd.f32 %v817, %v820
  %vm822 = vweird.f32 %v785
  %vm823 = vweird.f32 %v817
  %vm824 = vmor %vm822, %vm823
  %v825 = vsel %vm824, %v817, %v821
  %v826 = vand.u32 2147483647, %v785
  %vm827 = vcmp.eq.f32.partialorder %v826, 8.507059e+37
  %v828 = vand.u32 %v785, 2147483648
  %v829 = vor.u32 1.1754944e-38, %v828
  %v830 = vsel %vm827, %v829, %v825
  %v831 = vmul.f32 1.0, %v830
  %v832 = vrcp.pop %v786
  %v833 = vmul.f32 %v786, %v832
  %v834 = vsub.f32 1.0, %v833
  %v835 = vmul.f32 %v832, %v834
  %v836 = vadd.f32 %v832, %v835
  %vm837 = vweird.f32 %v786
  %vm838 = vweird.f32 %v832
  %vm839 = vmor %vm837, %vm838
  %v840 = vsel %vm839, %v832, %v836
  %v841 = vand.u32 2147483647, %v786
  %vm842 = vcmp.eq.f32.partialorder %v841, 8.507059e+37
  %v843 = vand.u32 %v786, 2147483648
  %v844 = vor.u32 1.1754944e-38, %v843
  %v845 = vsel %vm842, %v844, %v840
  %v846 = vmul.f32 1.0, %v845
  %847 = vset.pattern.permute.xlu0 8
  %848 = vperm.xlu0 %847, %v130
  %v849 = vpop.permute.xlu0 %848
  %851 = vset.pattern.permute.xlu0 8
  %852 = vperm.xlu0 %851, %v131
  %v853 = vpop.permute.xlu0 %852
  %855 = vset.pattern.permute.xlu0 8
  %856 = vperm.xlu0 %855, %v132
  %v857 = vpop.permute.xlu0 %856
  %859 = vset.pattern.permute.xlu0 8
  %860 = vperm.xlu0 %859, %v133
  %v861 = vpop.permute.xlu0 %860
  %v863 = vadd.f32 %v537, %v849
  %v864 = vadd.f32 %v539, %v853
  %v865 = vadd.f32 %v542, %v857
  %v866 = vadd.f32 %v544, %v861
  %867 = vset.pattern.permute.xlu0 9
  %868 = vperm.xlu0 %867, %v130
  %v869 = vpop.permute.xlu0 %868
  %871 = vset.pattern.permute.xlu0 9
  %872 = vperm.xlu0 %871, %v131
  %v873 = vpop.permute.xlu0 %872
  %875 = vset.pattern.permute.xlu0 9
  %876 = vperm.xlu0 %875, %v132
  %v877 = vpop.permute.xlu0 %876
  %879 = vset.pattern.permute.xlu0 9
  %880 = vperm.xlu0 %879, %v133
  %v881 = vpop.permute.xlu0 %880
  %v883 = vadd.f32 %v638, %v869
  %v884 = vadd.f32 %v640, %v873
  %v885 = vadd.f32 %v643, %v877
  %v886 = vadd.f32 %v645, %v881
  %v887 = vmul.f32 %v701, %v883
  %v888 = vmul.f32 %v716, %v884
  %v889 = vmul.f32 %v731, %v885
  %v890 = vmul.f32 %v746, %v886
  %v891 = vadd.f32 %v863, %v887
  %v892 = vadd.f32 %v864, %v888
  %v893 = vadd.f32 %v865, %v889
  %v894 = vadd.f32 %v866, %v890
  %v895 = vtanh.pop %v891
  %v896 = vtanh.pop %v892
  %v897 = vtanh.pop %v893
  %v898 = vtanh.pop %v894
  %v899 = vsub.f32 1.0, %v801
  %v900 = vsub.f32 1.0, %v816
  %v901 = vsub.f32 1.0, %v831
  %v902 = vsub.f32 1.0, %v846
  %v903 = vmul.f32 %v899, %v895
  %v904 = vmul.f32 %v900, %v896
  %v905 = vmul.f32 %v901, %v897
  %v906 = vmul.f32 %v902, %v898
  %v907 = vmul.f32 %v801, %v441
  %v908 = vmul.f32 %v816, %v442
  %v909 = vmul.f32 %v831, %v443
  %v910 = vmul.f32 %v846, %v444
  %v911 = vadd.f32 %v903, %v907
  %v912 = vadd.f32 %v904, %v908
  %v913 = vadd.f32 %v905, %v909
  %v914 = vadd.f32 %v906, %v910
  %915 = vst [vmem:[%s11] sm:$0xff] %v911
  %916 = vst [vmem:[%s11 + $0x8] sm:$0xff] %v912
  %917 = vst [vmem:[%s11 + $0x10] sm:$0xff] %v913
  %918 = vst [vmem:[%s11 + $0x18] sm:$0xff] %v914
  %v919 = vadd.f32 %v911, %v912
  %v920 = vadd.f32 %v919, %v913
  %v921 = vadd.f32 %v920, %v914
  %v922 = vrot.slane %v921, 4
  %v923 = vadd.f32 %v921, %v922
  %v924 = vrot.slane %v923, 2
  %v925 = vadd.f32 %v923, %v924
  %v926 = vrot.slane %v925, 1
  %v927 = vadd.f32 %v925, %v926
  %v928 = vmul.f32 %v927, %v213
  %v929 = vsub.f32 %v911, %v928
  %v930 = vsub.f32 %v912, %v928
  %v931 = vsub.f32 %v913, %v928
  %v932 = vsub.f32 %v914, %v928
  %v933 = vmul.f32 %v929, %v929
  %v934 = vmul.f32 %v930, %v930
  %v935 = vmul.f32 %v931, %v931
  %v936 = vmul.f32 %v932, %v932
  %v937 = vadd.f32 %v933, %v934
  %v938 = vadd.f32 %v937, %v935
  %v939 = vadd.f32 %v938, %v936
  %v940 = vrot.slane %v939, 4
  %v941 = vadd.f32 %v939, %v940
  %v942 = vrot.slane %v941, 2
  %v943 = vadd.f32 %v941, %v942
  %v944 = vrot.slane %v943, 1
  %v945 = vadd.f32 %v943, %v944
  %v946 = vmul.f32 %v945, %v213
  %v947 = vadd.f32 %v946, 1e-05
  %v948 = vrsqrt.pop %v947
  %v949 = vmul.f32 %v948, %v947
  %v950 = vmul.f32 %v949, %v948
  %v951 = vmul.f32 0.5, %v950
  %v952 = vsub.f32 1.5, %v951
  %v953 = vmul.f32 %v948, %v952
  %vm954 = vweird.f32 %v947
  %vm955 = vweird.f32 %v948
  %vm956 = vmor %vm954, %vm955
  %v957 = vsel %vm956, %v948, %v953
  %v958 = vmul.f32 %v929, %v957
  %v959 = vmul.f32 %v930, %v957
  %v960 = vmul.f32 %v931, %v957
  %v961 = vmul.f32 %v932, %v957
  %v962 = vld [vmem:[%s8] sm:$0xff]
  %v963 = vld [vmem:[%s8 + $0x8] sm:$0xff]
  %v964 = vld [vmem:[%s8 + $0x10] sm:$0xff]
  %v965 = vld [vmem:[%s8 + $0x18] sm:$0xff]
  %967 = vset.pattern.permute.xlu0 10
  %968 = vperm.xlu0 %967, %v962
  %v969 = vpop.permute.xlu0 %968
  %972 = vset.pattern.permute.xlu0 10
  %973 = vperm.xlu0 %972, %v963
  %v974 = vpop.permute.xlu0 %973
  %977 = vset.pattern.permute.xlu0 10
  %978 = vperm.xlu0 %977, %v964
  %v979 = vpop.permute.xlu0 %978
  %982 = vset.pattern.permute.xlu0 10
  %983 = vperm.xlu0 %982, %v965
  %v984 = vpop.permute.xlu0 %983
  %v986 = vmul.f32 %v958, %v969
  %v987 = vmul.f32 %v959, %v974
  %v988 = vmul.f32 %v960, %v979
  %v989 = vmul.f32 %v961, %v984
  %v990 = vadd.f32 %v986, %v987
  %v991 = vadd.f32 %v990, %v988
  %v992 = vadd.f32 %v991, %v989
  %v993 = vrot.slane %v992, 4
  %v994 = vadd.f32 %v992, %v993
  %v995 = vrot.slane %v994, 2
  %v996 = vadd.f32 %v994, %v995
  %v997 = vrot.slane %v996, 1
  %v998 = vadd.f32 %v996, %v997
  %v999 = vld [vmem:[#allocation2] sm:$0x1]
  %1001 = vset.pattern.permute.xlu0 0
  %1002 = vperm.xlu0 %1001, %v999
  %v1003 = vpop.permute.xlu0 %1002
  %v1005 = vperm.slane %v1003, 0
  %v1006 = vadd.f32 %v998, %v1005
  %1007 = vst [vmem:[%s10] sm:$0x1] %v1006
  // Predicated region
  $region42: #{r_critic_forward.1} parent=0 // pred_check
    _
  $region43: #{r_critic_forward.1} parent=0 // pred_check_branch
    %1009 = sbr.rel (0) target = $region45
  $region44: #{r_critic_forward.1} parent=0 // pred_region
    _
  $region45: #{r_critic_forward.1} parent=0 // pred_fallthru
    _
  // Predicated region
  $region46: #{r_critic_forward.1} parent=0 // pred_check
    _
  $region47: #{r_critic_forward.1} parent=0 // pred_check_branch
    %1011 = sbr.rel (0) target = $region49
  $region48: #{r_critic_forward.1} parent=0 // pred_region
    _
  $region49: #{r_critic_forward.1} parent=0 // pred_fallthru
    _
  // Predicated region
  $region50: #{r_critic_forward.1} parent=0 // pred_check
    _
  $region51: #{r_critic_forward.1} parent=0 // pred_check_branch
    %1013 = sbr.rel (0) target = $region53
  $region52: #{r_critic_forward.1} parent=0 // pred_region
    _
  $region53: #{r_critic_forward.1} parent=0 // pred_fallthru
    _
  // Predicated region
  $region54: #{r_critic_forward.1} parent=0 // pred_check
    _
  $region55: #{r_critic_forward.1} parent=0 // pred_check_branch
    %1015 = sbr.rel (0) target = $region57
  $region56: #{r_critic_forward.1} parent=0 // pred_region
    _
  $region57: #{r_critic_forward.1} parent=0 // pred_fallthru
    _

</llo_original>
